<compile_context>
chip_gen: v7x
topology: tpu7x:2x2x1
jax: 0.10.0
libtpu: 0.0.40
codegen_flags: <defaults>
</compile_context>

<pallas_src>
import jax
import jax.numpy as jnp
from jax.experimental import pallas as pl
from jax.experimental.pallas import tpu as pltpu


def _round_up(v: int, m: int) -> int:
    return ((v + m - 1) // m) * m


def _ensemble_kernel(x_ref, w_ref, b_ref, o_ref):
    """One batch tile of the folded ensemble forward.

    x_ref : (TB, H) VMEM, input dtype -- streamed batch tile
    w_ref : (H, 1)  VMEM              -- folded effective weight (resident)
    b_ref : (1,)    SMEM, f32         -- folded effective bias
    o_ref : (1, TB) VMEM, f32         -- lane-dense output row
    """
    col = jnp.dot(x_ref[...], w_ref[...], preferred_element_type=jnp.float32)  # (TB, 1)
    col = col + b_ref[0]
    # Lane-dense write: (TB, 1) -> (1, TB).  Pure relayout of a tiny value on
    # the XLU; removes masked per-sublane partial stores on the output.
    o_ref[...] = jnp.reshape(col, (1, col.shape[0])).astype(o_ref.dtype)


def my_ensemble(x, wa, wb, ba, bb, wc, bc, *, tb=None, tile_bytes_target=6 << 20):
    """Fused MyEnsemble forward.

    x  : (B, H)  input batch (f32 or bf16 -- streamed as-is, no wrapper copy)
    wa : (H, 1)  modelA weight (transposed Linear(H,1))
    wb : (H, 1)  modelB weight (transposed Linear(H,1))
    ba : (1,)    modelA bias
    bb : (1,)    modelB bias
    wc : (1, 2)  combiner weight (PyTorch Linear(2,1) layout)
    bc : (1,)    combiner bias
    returns (B, 1) f32
    """
    B, H = x.shape

    # ---- Exact algebraic fold (everything is linear); weights are tiny. ----
    c0 = wc[0, 0]
    c1 = wc[0, 1]
    w_eff = (wa * c0 + wb * c1).astype(x.dtype)                              # (H, 1)
    b_eff = (ba[0] * c0 + bb[0] * c1 + bc[0]).reshape(1).astype(jnp.float32)

    # ---- Batch tile sized by bytes (~tile_bytes_target), multiple of 128 rows,
    # clamped so a single block never grossly exceeds the batch.
    itemsize = x.dtype.itemsize
    if tb is None:
        tb = (tile_bytes_target // (H * itemsize)) // 128 * 128
    tb = int(min(max(128, (int(tb) // 128) * 128), _round_up(B, 128)))

    grid = (pl.cdiv(B, tb),)  # ragged last block: Pallas clips OOB writes

    # ---- Generation-aware VMEM budget: double-buffered x tile + weight +
    # double-buffered (tiny) out tile, capped under physical VMEM w/ headroom.
    x_tile_bytes = tb * H * itemsize
    w_bytes = H * w_eff.dtype.itemsize
    out_tile_bytes = tb * 4
    try:
        vmem_cap = pltpu.get_tpu_info().vmem_capacity_bytes
    except Exception:
        vmem_cap = 64 * 2**20  # conservative (v7x per-core physical VMEM)
    need = 2 * x_tile_bytes + w_bytes + 2 * out_tile_bytes + (2 << 20)
    vmem_limit = int(max(min(need, vmem_cap - (16 << 20)), 16 << 20))

    out_row = pl.pallas_call(
        _ensemble_kernel,
        out_shape=jax.ShapeDtypeStruct((1, B), jnp.float32),
        grid_spec=pl.GridSpec(
            grid=grid,
            in_specs=[
                # x: streamed batch tiles in their native dtype (auto double-buffered).
                pl.BlockSpec((tb, H), lambda i: (i, 0)),
                # folded weight: same block every step -> resident in VMEM.
                pl.BlockSpec((H, 1), lambda i: (0, 0)),
                # folded bias scalar in SMEM.
                pl.BlockSpec(memory_space=pltpu.MemorySpace.SMEM),
            ],
            # Lane-dense output row (last dim = tb, a multiple of 128).
            out_specs=pl.BlockSpec((1, tb), lambda i: (0, i)),
        ),
        compiler_params=pltpu.CompilerParams(
            # Batch axis is embarrassingly parallel -> shards across the two
            # TensorCores on v7x; harmless on v5e/v6e.
            dimension_semantics=("parallel",),
            vmem_limit_bytes=vmem_limit,
        ),
    )(x, w_eff, b_eff)

    # (1, B) row -> (B, 1) column (tiny host-side reshape).
    return out_row.reshape(B, 1)


def reference(x, wa, wb, ba, bb, wc, bc):
    """Unfused f32 reference matching the original PyTorch module semantics."""
    out1 = x @ wa + ba                                   # modelA(x): (B, 1)
    out2 = x @ wb + bb                                   # modelB(x): (B, 1)
    combined = jnp.concatenate([out1, out2], axis=1)     # (B, 2)
    return combined @ wc.T + bc                          # Linear(2, 1): (B, 1)


if __name__ == "__main__":
    # Small shapes, but large enough that the explicit-tile run exercises both
    # the grid loop and the ragged last block (300 = 2*128 + 44, grid=(3,)).
    B, H = 300, 256

    key = jax.random.PRNGKey(0)
    kx, ka, kb, kba, kbb, kc, kbc = jax.random.split(key, 7)

    x = jax.random.normal(kx, (B, H), dtype=jnp.float32)
    wa = jax.random.normal(ka, (H, 1), dtype=jnp.float32) * 0.1   # modelA weight^T
    wb = jax.random.normal(kb, (H, 1), dtype=jnp.float32) * 0.1   # modelB weight^T
    ba = jax.random.normal(kba, (1,), dtype=jnp.float32) * 0.1    # modelA bias
    bb = jax.random.normal(kbb, (1,), dtype=jnp.float32) * 0.1    # modelB bias
    wc = jax.random.normal(kc, (1, 2), dtype=jnp.float32) * 0.5   # combiner weight
    bc = jax.random.normal(kbc, (1,), dtype=jnp.float32) * 0.1    # combiner bias

    ref = reference(x, wa, wb, ba, bb, wc, bc)

    # 1) Explicit small tile: grid=(3,), ragged last block.
    out = jax.block_until_ready(my_ensemble(x, wa, wb, ba, bb, wc, bc, tb=128))
    assert out.shape == (B, 1), out.shape
    # Full f32 compute path -> tight tolerance vs. the unfused reference.
    assert jnp.allclose(out, ref, atol=1e-4, rtol=1e-4), (
        float(jnp.max(jnp.abs(out - ref)))
    )

    # 2) Auto byte-sized tile (single block here since B is small).
    out2 = jax.block_until_ready(my_ensemble(x, wa, wb, ba, bb, wc, bc))
    assert out2.shape == (B, 1), out2.shape
    assert jnp.allclose(out2, ref, atol=1e-4, rtol=1e-4), (
        float(jnp.max(jnp.abs(out2 - ref)))
    )

    print("KERNEL_OK")
</pallas_src>

<mosaic_0001>
module attributes {stable_mosaic.version = 11 : i64} {
  func.func @_ensemble_kernel(%arg0: i32, %arg1: memref<128x256xf32, #tpu.memory_space<vmem>>, %arg2: memref<256x1xf32, #tpu.memory_space<vmem>>, %arg3: memref<1xf32, #tpu.memory_space<smem>>, %arg4: memref<1x128xf32, #tpu.memory_space<vmem>>) attributes {dimension_semantics = [#tpu.dimension_semantics<parallel>], iteration_bounds = array<i64: 3>, scalar_prefetch = 0 : i64, scratch_operands = 0 : i64, tpu.core_type = #tpu.core_type<tc>, window_params = [{transform_indices = @transform_0, window_bounds = array<i64: 128, 256>}, {pipeline_mode = #tpu.pipeline_mode<synchronous>, transform_indices = @transform_1, window_bounds = array<i64: 256, 1>}, {transform_indices = @transform_2, window_bounds = array<i64: 1>}, {transform_indices = @transform_3, window_bounds = array<i64: 1, 128>}]} {
    %c0 = arith.constant 0 : index
    %c0_0 = arith.constant 0 : index
    %0 = vector.load %arg1[%c0, %c0_0] : memref<128x256xf32, #tpu.memory_space<vmem>>, vector<128x256xf32>
    %c0_1 = arith.constant 0 : index
    %c0_2 = arith.constant 0 : index
    %1 = vector.load %arg2[%c0_1, %c0_2] : memref<256x1xf32, #tpu.memory_space<vmem>>, vector<256x1xf32>
    %cst = arith.constant dense<0.000000e+00> : vector<128x1xf32>
    %2 = tpu.matmul %0, %1, %cst {dimension_numbers = #tpu.dot_dimension_numbers<[1], [0], [0], [1], [0, 0, 1, 1], [], []>} : vector<128x256xf32>, vector<256x1xf32>, vector<128x1xf32> -> vector<128x1xf32>
    %c0_3 = arith.constant 0 : index
    %3 = memref.load %arg3[%c0_3] : memref<1xf32, #tpu.memory_space<smem>>
    %4 = vector.broadcast %3 : f32 to vector<128x1xf32>
    %5 = arith.addf %2, %4 : vector<128x1xf32>
    %6 = vector.shape_cast %5 : vector<128x1xf32> to vector<1x128xf32>
    %c0_4 = arith.constant 0 : index
    %c0_5 = arith.constant 0 : index
    %7 = vector.load %arg4[%c0_4, %c0_5] : memref<1x128xf32, #tpu.memory_space<vmem>>, vector<1x128xf32>
    tpu.vector_store %arg4[%c0_4, %c0_5], %6 {strides = array<i32>} : memref<1x128xf32, #tpu.memory_space<vmem>>, vector<1x128xf32>,
    return
  }
  func.func @transform_0(%arg0: i32) -> (i32, i32) {
    %c0_i32 = arith.constant 0 : i32
    %c0_i32_0 = arith.constant 0 : i32
    return %arg0, %c0_i32 : i32, i32
  }
  func.func @transform_1(%arg0: i32) -> (i32, i32) {
    %c0_i32 = arith.constant 0 : i32
    %c0_i32_0 = arith.constant 0 : i32
    %c0_i32_1 = arith.constant 0 : i32
    return %c0_i32, %c0_i32_0 : i32, i32
  }
  func.func @transform_2(%arg0: i32) -> i32 {
    %c0_i32 = arith.constant 0 : i32
    %c0_i32_0 = arith.constant 0 : i32
    return %c0_i32 : i32
  }
  func.func @transform_3(%arg0: i32) -> (i32, i32) {
    %c0_i32 = arith.constant 0 : i32
    %c0_i32_0 = arith.constant 0 : i32
    return %c0_i32, %arg0 : i32, i32
  }
}

</mosaic_0001>

<llo_original>
// kernel: tpu_custom_call.1
$region0: #{tpu_custom_call.1}
  #allocation0 [shape = 'u32[]', space=smem, size = 0x4, offset = 0x4, fixed_abs, tag = 'smem constant byte address 0x4 - core index']
  #allocation1 [shape = 'u32[144,128]{1,0:T(1,128)}', space=vmem, size = 0x12000, scoped, tag = 'internal scratch']
  #allocation2 [shape = 'f32[1]{0:T(128)S(6)}', space=smem, size = 0x200, scoped, tag = 'scoped memory for tpu_custom_call.1']
  %s0 = inlined_call_operand.hbm [shape: f32[300,256], index: 0, kind: input, shape index: {}]
  %s1 = inlined_call_operand.vmem [shape: f32[256,1], index: 1, kind: input, shape index: {}]
  %s2 = inlined_call_operand.<no memory space> [shape: f32[1], index: 2, kind: input, shape index: {}]
  %s3 = inlined_call_operand.hbm [shape: f32[1,300], index: 3, kind: output, shape index: {}]
  %s4 = sld [smem:[#allocation0]]
  $region49: #{tpu_custom_call.1} parent=0
    _
  %s6 = ssub.s32 1, %s4
  %s7 = scalar_select 0, %s6, %s4
  %8 = sst [smem:[#allocation2]] %s2
  $region1: #{tpu_custom_call.1} parent=0
    #allocation3 [shape = 'u8[262144]{0}', space=vmem, size = 0x40000, scoped, tag = 'input window, operand 0']
    #allocation4 [shape = 's32[2]{0}', space=sflag, size = 0x8, scoped, tag = 'scoped memory for tpu_custom_call.1']
    #allocation5 [shape = 's32[2]{0}', space=sflag, size = 0x8, scoped, tag = 'scoped memory for tpu_custom_call.1']
    #allocation6 [shape = 'u8[1024]{0}', space=vmem, size = 0x400, scoped, tag = 'output window, operand 0']
    %9 = vsyncpa [#allocation4], 0
    %s10 = scalar_lea.sflag [#allocation4], 1
    %11 = vsyncpa %s10, 0
    %12 = vsyncpa [#allocation5], 0
    %s13 = scalar_lea.sflag [#allocation5], 1
    %14 = vsyncpa %s13, 0
    loop: start=0, step=1, limit=5
    $region2: #{tpu_custom_call.1} parent=1 // loop_pre_header
      _
    $region3: #{tpu_custom_call.1} parent=1 // loop_header
      %s16 = sphi 0, %s20
      %p17 = scmp.ge.s32.totalorder %s16, 5
      %s26 = sphi 0, %s28
      %s29 = sphi 0, %s26
      %s30 = sphi 0, %s29
      %s46 = sphi 0, %s30
      %s50 = sphi 0, %s50
      %s52 = sphi 0, %s50
      %s53 = sphi 0, %s52
      %s67 = sphi 0, %s53
      %s71 = sphi 0, %s71
      %s73 = sphi 0, %s71
      %s74 = sphi 0, %s73
      %s88 = sphi 0, %s74
      %s94 = sphi 0, %s96
      %s97 = sphi 0, %s94
      %s98 = sphi 0, %s97
      %s114 = sphi 0, %s98
    $region4: #{tpu_custom_call.1} parent=1 // loop_header_branch
      %19 = sbr.rel (%p17) target = $region8
    $region5: #{tpu_custom_call.1} parent=1 // loop_body
      %s21 = ssub.s32 %s16, 1
      %s22 = ssub.s32 %s16, 2
      %s23 = sadd.s32 %s16, 1
      %s24 = ssub.s32 %s16, %s23
      %p25 = scmp.eq.s32.totalorder %s24, 0
      %s27 = sadd.s32 %s26, 1
      %s28 = scalar_select %p25, %s26, %s27
      %p31 = pneg %p25
      %p32 = scmp.eq.s32.totalorder %s16, 2
      %p33 = por %p31, %p32
      %p34 = scmp.ne.s32.totalorder %s26, %s29
      %p35 = scmp.eq.s32.totalorder %s16, 0
      %p36 = por %p34, %p35
      %p37 = scmp.ne.s32.totalorder %s26, %s29
      %p38 = scmp.eq.s32.totalorder %s21, 2
      %p39 = por %p37, %p38
      %p40 = scmp.ne.s32.totalorder %s29, %s30
      %p41 = scmp.eq.s32.totalorder %s21, 0
      %p42 = por %p40, %p41
      %p43 = scmp.ne.s32.totalorder %s29, %s30
      %p44 = scmp.eq.s32.totalorder %s22, 2
      %p45 = por %p43, %p44
      %p47 = scmp.ne.s32.totalorder %s30, %s46
      %p48 = scmp.eq.s32.totalorder %s22, 0
      %p49 = por %p47, %p48
      %s51 = sadd.s32 %s50, 1
      %p54 = scmp.eq.s32.totalorder %s16, 2
      %p55 = scmp.ne.s32.totalorder %s50, %s52
      %p56 = scmp.eq.s32.totalorder %s16, 0
      %p57 = por %p55, %p56
      %p58 = scmp.ne.s32.totalorder %s50, %s52
      %p59 = scmp.eq.s32.totalorder %s21, 2
      %p60 = por %p58, %p59
      %p61 = scmp.ne.s32.totalorder %s52, %s53
      %p62 = scmp.eq.s32.totalorder %s21, 0
      %p63 = por %p61, %p62
      %p64 = scmp.ne.s32.totalorder %s52, %s53
      %p65 = scmp.eq.s32.totalorder %s22, 2
      %p66 = por %p64, %p65
      %p68 = scmp.ne.s32.totalorder %s53, %s67
      %p69 = scmp.eq.s32.totalorder %s22, 0
      %p70 = por %p68, %p69
      %s72 = sadd.s32 %s71, 1
      %p75 = scmp.eq.s32.totalorder %s16, 2
      %p76 = scmp.ne.s32.totalorder %s71, %s73
      %p77 = scmp.eq.s32.totalorder %s16, 0
      %p78 = por %p76, %p77
      %p79 = scmp.ne.s32.totalorder %s71, %s73
      %p80 = scmp.eq.s32.totalorder %s21, 2
      %p81 = por %p79, %p80
      %p82 = scmp.ne.s32.totalorder %s73, %s74
      %p83 = scmp.eq.s32.totalorder %s21, 0
      %p84 = por %p82, %p83
      %p85 = scmp.ne.s32.totalorder %s73, %s74
      %p86 = scmp.eq.s32.totalorder %s22, 2
      %p87 = por %p85, %p86
      %p89 = scmp.ne.s32.totalorder %s74, %s88
      %p90 = scmp.eq.s32.totalorder %s22, 0
      %p91 = por %p89, %p90
      %s92 = ssub.s32 %s16, %s23
      %p93 = scmp.eq.s32.totalorder %s92, 0
      %s95 = sadd.s32 %s94, 1
      %s96 = scalar_select %p93, %s94, %s95
      %p99 = pneg %p93
      %p100 = scmp.eq.s32.totalorder %s16, 2
      %p101 = por %p99, %p100
      %p102 = scmp.ne.s32.totalorder %s94, %s97
      %p103 = scmp.eq.s32.totalorder %s16, 0
      %p104 = por %p102, %p103
      %p105 = scmp.ne.s32.totalorder %s94, %s97
      %p106 = scmp.eq.s32.totalorder %s21, 2
      %p107 = por %p105, %p106
      %p108 = scmp.ne.s32.totalorder %s97, %s98
      %p109 = scmp.eq.s32.totalorder %s21, 0
      %p110 = por %p108, %p109
      %p111 = scmp.ne.s32.totalorder %s97, %s98
      %p112 = scmp.eq.s32.totalorder %s22, 2
      %p113 = por %p111, %p112
      %p115 = scmp.ne.s32.totalorder %s98, %s114
      %p116 = scmp.eq.s32.totalorder %s22, 0
      %p117 = por %p115, %p116
      %p118 = scmp.le.s32.totalorder 1, %s16
      %p119 = scmp.lt.s32.totalorder %s16, 4
      %p120 = pnand %p118, %p119
      %p121 = pneg %p120
      // Predicated region
      $region9: #{tpu_custom_call.1} parent=5 // pred_check
        _
      $region10: #{tpu_custom_call.1} parent=5 // pred_check_branch
        %123 = sbr.rel (%p120) target = $region12
      $region11: #{tpu_custom_call.1} parent=5 // pred_region
        %s124 = ssub.s32 %s16, 1
        // Predicated region
        $region13: #{tpu_custom_call.1} parent=11 // pred_check
          %p125 = pneg %p63
        $region14: #{tpu_custom_call.1} parent=11 // pred_check_branch
          %127 = sbr.rel (%p125) target = $region16
        $region15: #{tpu_custom_call.1} parent=11 // pred_region
          _
        $region16: #{tpu_custom_call.1} parent=11 // pred_fallthru
          _
        // Predicated region
        $region17: #{tpu_custom_call.1} parent=11 // pred_check
          %p128 = pneg %p84
        $region18: #{tpu_custom_call.1} parent=11 // pred_check_branch
          %130 = sbr.rel (%p128) target = $region20
        $region19: #{tpu_custom_call.1} parent=11 // pred_region
          _
        $region20: #{tpu_custom_call.1} parent=11 // pred_fallthru
          _
      $region12: #{tpu_custom_call.1} parent=5 // pred_fallthru
        _
      %p131 = scmp.lt.s32.totalorder %s16, 3
      // Predicated region
      $region21: #{tpu_custom_call.1} parent=5 // pred_check
        %p132 = pneg %p131
      $region22: #{tpu_custom_call.1} parent=5 // pred_check_branch
        %134 = sbr.rel (%p132) target = $region24
      $region23: #{tpu_custom_call.1} parent=5 // pred_region
        // Predicated region
        $region25: #{tpu_custom_call.1} parent=23 // pred_check
          %p135 = pneg %p36
        $region26: #{tpu_custom_call.1} parent=23 // pred_check_branch
          %137 = sbr.rel (%p135) target = $region28
        $region27: #{tpu_custom_call.1} parent=23 // pred_region
          %s138 = sand.u32 %s26, 1
          %s139 = scalar_lea.sflag [#allocation4], %s138
          %s140 = sand.u32 %s26, 1
          %s141 = smul.addr %s140, 256
          %s142 = scalar_lea.vmem [#allocation3], %s141
          %s143 = smul.u32 16, %s16
          %s144 = ssub.s32 38, %s143
          %p145 = scmp.lt.s32.totalorder %s144, 16
          %s146 = scalar_select %p145, %s144, 16
          %s147 = smul.u32 128, %s146
          %s148 = smul.u32 %s147, 2
          %s150 = ssub.s32 4096, %s148
          %151 = vsyncadd %s139, %s150
          %p152 = scmp.ne.s32.totalorder 0, %s148
          %s153 = smul.addr %s143, 2
          %s154 = smul.addr %s153, 128
          %s155 = scalar_lea.hbm %s0, %s154
          %s156 = smul.u32 16, %s146
          %s157 = sshll.u32 %s142, 4
          %s158 = int_to_ptr.vmem [resolvable:$true] %s157
          %s159 = sshll.u32 %s156, 4
          %163 = dma.hbm_to_vmem [thread:$0]  (%p152), %s155, %s159, %s158, %s139, 256, 256, 16
        $region28: #{tpu_custom_call.1} parent=23 // pred_fallthru
          _
      $region24: #{tpu_custom_call.1} parent=5 // pred_fallthru
        _
      %p164 = scmp.le.s32.totalorder 1, %s16
      %p165 = scmp.lt.s32.totalorder %s16, 4
      %p166 = pnand %p164, %p165
      %p167 = pneg %p166
      // Predicated region
      $region29: #{tpu_custom_call.1} parent=5 // pred_check
        _
      $region30: #{tpu_custom_call.1} parent=5 // pred_check_branch
        %169 = sbr.rel (%p166) target = $region32
      $region31: #{tpu_custom_call.1} parent=5 // pred_region
        %s170 = ssub.s32 %s16, 1
        %s171 = sand.u32 %s29, 1
        %s172 = scalar_lea.sflag [#allocation4], %s171
        %s173 = sand.u32 %s29, 1
        %s174 = smul.addr %s173, 256
        %s175 = scalar_lea.vmem [#allocation3], %s174
        // Predicated region
        $region33: #{tpu_custom_call.1} parent=31 // pred_check
          %p176 = pneg %p42
        $region34: #{tpu_custom_call.1} parent=31 // pred_check_branch
          %178 = sbr.rel (%p176) target = $region36
        $region35: #{tpu_custom_call.1} parent=31 // pred_region
          %179 = dma.done %s172, 4096
        $region36: #{tpu_custom_call.1} parent=31 // pred_fallthru
          _
        %s180 = sand.u32 %s29, 1
        %s181 = scalar_lea.sflag [#allocation4], %s180
        %s182 = sand.u32 %s29, 1
        %s183 = smul.addr %s182, 256
        %s184 = scalar_lea.vmem [#allocation3], %s183
        %p185 = pneg %p42
        %p186 = pneg %p39
        %p187 = pneg %p63
        %p188 = pneg %p60
        %p189 = pneg %p84
        %p190 = pneg %p81
        %p191 = pneg %p110
        %p192 = pneg %p107
        %s193 = sand.u32 %s97, 1
        %s194 = scalar_lea.sflag [#allocation5], %s193
        %s195 = sand.u32 %s97, 1
        %s196 = scalar_lea.vmem [#allocation6], %s195
        %s197 = smul.u32 16, %s21
        %s198 = ssub.s32 38, %s197
        %p199 = scmp.lt.s32.totalorder %s198, 16
        %s200 = scalar_select %p199, %s198, 16
        %s201 = smul.u32 128, %s200
        %s202 = smul.u32 %s201, 2
        %v203 = vld [vmem:[%s175] sm:$0xff]
        %v204 = vld [vmem:[%s175 + $0x8] sm:$0xff]
        %v205 = vld [vmem:[%s175 + $0x10] sm:$0xff]
        %v206 = vld [vmem:[%s175 + $0x18] sm:$0xff]
        %v207 = vld [vmem:[%s175 + $0x20] sm:$0xff]
        %v208 = vld [vmem:[%s175 + $0x28] sm:$0xff]
        %v209 = vld [vmem:[%s175 + $0x30] sm:$0xff]
        %v210 = vld [vmem:[%s175 + $0x38] sm:$0xff]
        %v211 = vld [vmem:[%s175 + $0x40] sm:$0xff]
        %v212 = vld [vmem:[%s175 + $0x48] sm:$0xff]
        %v213 = vld [vmem:[%s175 + $0x50] sm:$0xff]
        %v214 = vld [vmem:[%s175 + $0x58] sm:$0xff]
        %v215 = vld [vmem:[%s175 + $0x60] sm:$0xff]
        %v216 = vld [vmem:[%s175 + $0x68] sm:$0xff]
        %v217 = vld [vmem:[%s175 + $0x70] sm:$0xff]
        %v218 = vld [vmem:[%s175 + $0x78] sm:$0xff]
        %v219 = vld [vmem:[%s175 + $0x80] sm:$0xff]
        %v220 = vld [vmem:[%s175 + $0x88] sm:$0xff]
        %v221 = vld [vmem:[%s175 + $0x90] sm:$0xff]
        %v222 = vld [vmem:[%s175 + $0x98] sm:$0xff]
        %v223 = vld [vmem:[%s175 + $0xa0] sm:$0xff]
        %v224 = vld [vmem:[%s175 + $0xa8] sm:$0xff]
        %v225 = vld [vmem:[%s175 + $0xb0] sm:$0xff]
        %v226 = vld [vmem:[%s175 + $0xb8] sm:$0xff]
        %v227 = vld [vmem:[%s175 + $0xc0] sm:$0xff]
        %v228 = vld [vmem:[%s175 + $0xc8] sm:$0xff]
        %v229 = vld [vmem:[%s175 + $0xd0] sm:$0xff]
        %v230 = vld [vmem:[%s175 + $0xd8] sm:$0xff]
        %v231 = vld [vmem:[%s175 + $0xe0] sm:$0xff]
        %v232 = vld [vmem:[%s175 + $0xe8] sm:$0xff]
        %v233 = vld [vmem:[%s175 + $0xf0] sm:$0xff]
        %v234 = vld [vmem:[%s175 + $0xf8] sm:$0xff]
        %v235 = vld [vmem:[%s1] sm:$0xff]
        %v236 = vld [vmem:[%s1 + $0x8] sm:$0xff]
        %v237 = vld [vmem:[%s1 + $0x10] sm:$0xff]
        %v238 = vld [vmem:[%s1 + $0x18] sm:$0xff]
        %v239 = vld [vmem:[%s1 + $0x20] sm:$0xff]
        %v240 = vld [vmem:[%s1 + $0x28] sm:$0xff]
        %v241 = vld [vmem:[%s1 + $0x30] sm:$0xff]
        %v242 = vld [vmem:[%s1 + $0x38] sm:$0xff]
        %v243 = vld [vmem:[%s1 + $0x40] sm:$0xff]
        %v244 = vld [vmem:[%s1 + $0x48] sm:$0xff]
        %v245 = vld [vmem:[%s1 + $0x50] sm:$0xff]
        %v246 = vld [vmem:[%s1 + $0x58] sm:$0xff]
        %v247 = vld [vmem:[%s1 + $0x60] sm:$0xff]
        %v248 = vld [vmem:[%s1 + $0x68] sm:$0xff]
        %v249 = vld [vmem:[%s1 + $0x70] sm:$0xff]
        %v250 = vld [vmem:[%s1 + $0x78] sm:$0xff]
        %v251 = vld [vmem:[%s1 + $0x80] sm:$0xff]
        %v252 = vld [vmem:[%s1 + $0x88] sm:$0xff]
        %v253 = vld [vmem:[%s1 + $0x90] sm:$0xff]
        %v254 = vld [vmem:[%s1 + $0x98] sm:$0xff]
        %v255 = vld [vmem:[%s1 + $0xa0] sm:$0xff]
        %v256 = vld [vmem:[%s1 + $0xa8] sm:$0xff]
        %v257 = vld [vmem:[%s1 + $0xb0] sm:$0xff]
        %v258 = vld [vmem:[%s1 + $0xb8] sm:$0xff]
        %v259 = vld [vmem:[%s1 + $0xc0] sm:$0xff]
        %v260 = vld [vmem:[%s1 + $0xc8] sm:$0xff]
        %v261 = vld [vmem:[%s1 + $0xd0] sm:$0xff]
        %v262 = vld [vmem:[%s1 + $0xd8] sm:$0xff]
        %v263 = vld [vmem:[%s1 + $0xe0] sm:$0xff]
        %v264 = vld [vmem:[%s1 + $0xe8] sm:$0xff]
        %v265 = vld [vmem:[%s1 + $0xf0] sm:$0xff]
        %v266 = vld [vmem:[%s1 + $0xf8] sm:$0xff]
        %s267 = sld [smem:[#allocation2]]
        %v268 = vstv %s267
        %269 = vmatprep.subr.mxu0 0.0
        %270 = vmatpush1.msra.mxu0 %v235
        %271 = vmatprep.subr.mxu0 0.0
        %272 = vmatpush1.msra.mxu0 %v236
        %273 = vmatprep.subr.mxu0 0.0
        %274 = vmatpush1.msra.mxu0 %v237
        %275 = vmatprep.subr.mxu0 0.0
        %276 = vmatpush1.msra.mxu0 %v238
        %277 = vmatprep.subr.mxu0 0.0
        %278 = vmatpush1.msra.mxu0 %v239
        %279 = vmatprep.subr.mxu0 0.0
        %280 = vmatpush1.msra.mxu0 %v240
        %281 = vmatprep.subr.mxu0 0.0
        %282 = vmatpush1.msra.mxu0 %v241
        %283 = vmatprep.subr.mxu0 0.0
        %284 = vmatpush1.msra.mxu0 %v242
        %285 = vmatprep.subr.mxu0 0.0
        %286 = vmatpush1.msra.mxu0 %v243
        %287 = vmatprep.subr.mxu0 0.0
        %288 = vmatpush1.msra.mxu0 %v244
        %289 = vmatprep.subr.mxu0 0.0
        %290 = vmatpush1.msra.mxu0 %v245
        %291 = vmatprep.subr.mxu0 0.0
        %292 = vmatpush1.msra.mxu0 %v246
        %293 = vmatprep.subr.mxu0 0.0
        %294 = vmatpush1.msra.mxu0 %v247
        %295 = vmatprep.subr.mxu0 0.0
        %296 = vmatpush1.msra.mxu0 %v248
        %297 = vmatprep.subr.mxu0 0.0
        %298 = vmatpush1.msra.mxu0 %v249
        %299 = vmatprep.subr.mxu0 0.0
        %300 = vmatpush1.msra.mxu0 %v250
        %301 = vmatprep.subr.mxu0 0.0
        %302 = vmatpush1.msra.mxu0 %v251
        %303 = vmatprep.subr.mxu0 0.0
        %304 = vmatpush1.msra.mxu0 %v252
        %305 = vmatprep.subr.mxu0 0.0
        %306 = vmatpush1.msra.mxu0 %v253
        %307 = vmatprep.subr.mxu0 0.0
        %308 = vmatpush1.msra.mxu0 %v254
        %309 = vmatprep.subr.mxu0 0.0
        %310 = vmatpush1.msra.mxu0 %v255
        %311 = vmatprep.subr.mxu0 0.0
        %312 = vmatpush1.msra.mxu0 %v256
        %313 = vmatprep.subr.mxu0 0.0
        %314 = vmatpush1.msra.mxu0 %v257
        %315 = vmatprep.subr.mxu0 0.0
        %316 = vmatpush1.msra.mxu0 %v258
        %317 = vmatprep.subr.mxu0 0.0
        %318 = vmatpush1.msra.mxu0 %v259
        %319 = vmatprep.subr.mxu0 0.0
        %320 = vmatpush1.msra.mxu0 %v260
        %321 = vmatprep.subr.mxu0 0.0
        %322 = vmatpush1.msra.mxu0 %v261
        %323 = vmatprep.subr.mxu0 0.0
        %324 = vmatpush1.msra.mxu0 %v262
        %325 = vmatprep.subr.mxu0 0.0
        %326 = vmatpush1.msra.mxu0 %v263
        %327 = vmatprep.subr.mxu0 0.0
        %328 = vmatpush1.msra.mxu0 %v264
        %329 = vmatprep.subr.mxu0 0.0
        %330 = vmatpush1.msra.mxu0 %v265
        %331 = vmatprep.subr.mxu0 0.0
        %332 = vmatpush1.msra.mxu0 %v266
        %333 = vmatprep.mubr.f32.mxu0 %v204
        %334 = vmatmul.mubr.f32.gmra.mrb[0].mxu0 %v203
        %v335 = vpop.f32.mrb[0].mxu0
        %v336 = vadd.f32 %v268, %v335
        %v337 = vpop.f32.mrb[0].mxu0
        %338 = vmatprep.mubr.f32.mxu0 %v206
        %339 = vmatmul.mubr.f32.gmra.mrb[0].mxu0 %v205
        %v340 = vpop.f32.mrb[0].mxu0
        %v341 = vadd.f32 %v268, %v340
        %v342 = vpop.f32.mrb[0].mxu0
        %343 = vmatprep.mubr.f32.mxu0 %v208
        %344 = vmatmul.mubr.f32.gmra.mrb[0].mxu0 %v207
        %v345 = vpop.f32.mrb[0].mxu0
        %v346 = vadd.f32 %v268, %v345
        %v347 = vpop.f32.mrb[0].mxu0
        %348 = vmatprep.mubr.f32.mxu0 %v210
        %349 = vmatmul.mubr.f32.gmra.mrb[0].mxu0 %v209
        %v350 = vpop.f32.mrb[0].mxu0
        %v351 = vadd.f32 %v268, %v350
        %v352 = vpop.f32.mrb[0].mxu0
        %353 = vmatprep.mubr.f32.mxu0 %v212
        %354 = vmatmul.mubr.f32.gmra.mrb[0].mxu0 %v211
        %v355 = vpop.f32.mrb[0].mxu0
        %v356 = vadd.f32 %v268, %v355
        %v357 = vpop.f32.mrb[0].mxu0
        %358 = vmatprep.mubr.f32.mxu0 %v214
        %359 = vmatmul.mubr.f32.gmra.mrb[0].mxu0 %v213
        %v360 = vpop.f32.mrb[0].mxu0
        %v361 = vadd.f32 %v268, %v360
        %v362 = vpop.f32.mrb[0].mxu0
        %363 = vmatprep.mubr.f32.mxu0 %v216
        %364 = vmatmul.mubr.f32.gmra.mrb[0].mxu0 %v215
        %v365 = vpop.f32.mrb[0].mxu0
        %v366 = vadd.f32 %v268, %v365
        %v367 = vpop.f32.mrb[0].mxu0
        %368 = vmatprep.mubr.f32.mxu0 %v218
        %369 = vmatmul.mubr.f32.gmra.mrb[0].mxu0 %v217
        %v370 = vpop.f32.mrb[0].mxu0
        %v371 = vadd.f32 %v268, %v370
        %v372 = vpop.f32.mrb[0].mxu0
        %373 = vmatprep.mubr.f32.mxu0 %v220
        %374 = vmatmul.mubr.f32.gmra.mrb[0].mxu0 %v219
        %v375 = vpop.f32.mrb[0].mxu0
        %v376 = vadd.f32 %v268, %v375
        %v377 = vpop.f32.mrb[0].mxu0
        %378 = vmatprep.mubr.f32.mxu0 %v222
        %379 = vmatmul.mubr.f32.gmra.mrb[0].mxu0 %v221
        %v380 = vpop.f32.mrb[0].mxu0
        %v381 = vadd.f32 %v268, %v380
        %v382 = vpop.f32.mrb[0].mxu0
        %383 = vmatprep.mubr.f32.mxu0 %v224
        %384 = vmatmul.mubr.f32.gmra.mrb[0].mxu0 %v223
        %v385 = vpop.f32.mrb[0].mxu0
        %v386 = vadd.f32 %v268, %v385
        %v387 = vpop.f32.mrb[0].mxu0
        %388 = vmatprep.mubr.f32.mxu0 %v226
        %389 = vmatmul.mubr.f32.gmra.mrb[0].mxu0 %v225
        %v390 = vpop.f32.mrb[0].mxu0
        %v391 = vadd.f32 %v268, %v390
        %v392 = vpop.f32.mrb[0].mxu0
        %393 = vmatprep.mubr.f32.mxu0 %v228
        %394 = vmatmul.mubr.f32.gmra.mrb[0].mxu0 %v227
        %v395 = vpop.f32.mrb[0].mxu0
        %v396 = vadd.f32 %v268, %v395
        %v397 = vpop.f32.mrb[0].mxu0
        %398 = vmatprep.mubr.f32.mxu0 %v230
        %399 = vmatmul.mubr.f32.gmra.mrb[0].mxu0 %v229
        %v400 = vpop.f32.mrb[0].mxu0
        %v401 = vadd.f32 %v268, %v400
        %v402 = vpop.f32.mrb[0].mxu0
        %403 = vmatprep.mubr.f32.mxu0 %v232
        %404 = vmatmul.mubr.f32.gmra.mrb[0].mxu0 %v231
        %v405 = vpop.f32.mrb[0].mxu0
        %v406 = vadd.f32 %v268, %v405
        %v407 = vpop.f32.mrb[0].mxu0
        %408 = vmatprep.mubr.f32.mxu0 %v234
        %409 = vmatmul.mubr.f32.gmra.mrb[0].mxu0 %v233
        %v410 = vpop.f32.mrb[0].mxu0
        %v411 = vadd.f32 %v268, %v410
        %v412 = vpop.f32.mrb[0].mxu0
        %413 = vdwg.mxu0
        %430 = vset.pattern.permute.xlu0 0
        %431 = vperm.xlu0 %430, %v336
        %v432 = vpop.permute.xlu0 %431
        %433 = vset.pattern.permute.xlu0 0
        %434 = vperm.xlu0 %433, %v341
        %v435 = vpop.permute.xlu0 %434
        %436 = vset.pattern.permute.xlu0 0
        %437 = vperm.xlu0 %436, %v346
        %v438 = vpop.permute.xlu0 %437
        %439 = vset.pattern.permute.xlu0 0
        %440 = vperm.xlu0 %439, %v351
        %v441 = vpop.permute.xlu0 %440
        %442 = vset.pattern.permute.xlu0 0
        %443 = vperm.xlu0 %442, %v356
        %v444 = vpop.permute.xlu0 %443
        %445 = vset.pattern.permute.xlu0 0
        %446 = vperm.xlu0 %445, %v361
        %v447 = vpop.permute.xlu0 %446
        %448 = vset.pattern.permute.xlu0 0
        %449 = vperm.xlu0 %448, %v366
        %v450 = vpop.permute.xlu0 %449
        %451 = vset.pattern.permute.xlu0 0
        %452 = vperm.xlu0 %451, %v371
        %v453 = vpop.permute.xlu0 %452
        %454 = vset.pattern.permute.xlu0 0
        %455 = vperm.xlu0 %454, %v376
        %v456 = vpop.permute.xlu0 %455
        %457 = vset.pattern.permute.xlu0 0
        %458 = vperm.xlu0 %457, %v381
        %v459 = vpop.permute.xlu0 %458
        %460 = vset.pattern.permute.xlu0 0
        %461 = vperm.xlu0 %460, %v386
        %v462 = vpop.permute.xlu0 %461
        %463 = vset.pattern.permute.xlu0 0
        %464 = vperm.xlu0 %463, %v391
        %v465 = vpop.permute.xlu0 %464
        %466 = vset.pattern.permute.xlu0 0
        %467 = vperm.xlu0 %466, %v396
        %v468 = vpop.permute.xlu0 %467
        %469 = vset.pattern.permute.xlu0 0
        %470 = vperm.xlu0 %469, %v401
        %v471 = vpop.permute.xlu0 %470
        %472 = vset.pattern.permute.xlu0 0
        %473 = vperm.xlu0 %472, %v406
        %v474 = vpop.permute.xlu0 %473
        %475 = vset.pattern.permute.xlu0 0
        %476 = vperm.xlu0 %475, %v411
        %v477 = vpop.permute.xlu0 %476
        %v478 = vlaneseq
        %v479 = vand.u32 %v478, 127
        %v480 = vlaneseq
        %v481 = vshrl.u32 %v480, 7
        %v482 = vsub.s32 %v479, %v481
        %v483 = vrot.slane %v432, %v482
        %v484 = vadd.s32 %v479, 4294967288
        %v485 = vlaneseq
        %v486 = vshrl.u32 %v485, 7
        %v487 = vsub.s32 %v484, %v486
        %v488 = vrot.slane %v435, %v487
        %vm489 = vcmask 130112
        %v490 = vsel %vm489, %v488, %v483
        %v491 = vadd.s32 %v479, 4294967280
        %v492 = vlaneseq
        %v493 = vshrl.u32 %v492, 7
        %v494 = vsub.s32 %v491, %v493
        %v495 = vrot.slane %v438, %v494
        %vm496 = vcmask 195712
        %v497 = vsel %vm496, %v495, %v490
        %v498 = vadd.s32 %v479, 4294967272
        %v499 = vlaneseq
        %v500 = vshrl.u32 %v499, 7
        %v501 = vsub.s32 %v498, %v500
        %v502 = vrot.slane %v441, %v501
        %vm503 = vcmask 261312
        %v504 = vsel %vm503, %v502, %v497
        %v505 = vadd.s32 %v479, 4294967264
        %v506 = vlaneseq
        %v507 = vshrl.u32 %v506, 7
        %v508 = vsub.s32 %v505, %v507
        %v509 = vrot.slane %v444, %v508
        %vm510 = vcmask 326912
        %v511 = vsel %vm510, %v509, %v504
        %v512 = vadd.s32 %v479, 4294967256
        %v513 = vlaneseq
        %v514 = vshrl.u32 %v513, 7
        %v515 = vsub.s32 %v512, %v514
        %v516 = vrot.slane %v447, %v515
        %vm517 = vcmask 392512
        %v518 = vsel %vm517, %v516, %v511
        %v519 = vadd.s32 %v479, 4294967248
        %v520 = vlaneseq
        %v521 = vshrl.u32 %v520, 7
        %v522 = vsub.s32 %v519, %v521
        %v523 = vrot.slane %v450, %v522
        %vm524 = vcmask 458112
        %v525 = vsel %vm524, %v523, %v518
        %v526 = vadd.s32 %v479, 4294967240
        %v527 = vlaneseq
        %v528 = vshrl.u32 %v527, 7
        %v529 = vsub.s32 %v526, %v528
        %v530 = vrot.slane %v453, %v529
        %vm531 = vcmask 523712
        %v532 = vsel %vm531, %v530, %v525
        %v533 = vadd.s32 %v479, 4294967232
        %v534 = vlaneseq
        %v535 = vshrl.u32 %v534, 7
        %v536 = vsub.s32 %v533, %v535
        %v537 = vrot.slane %v456, %v536
        %vm538 = vcmask 589312
        %v539 = vsel %vm538, %v537, %v532
        %v540 = vadd.s32 %v479, 4294967224
        %v541 = vlaneseq
        %v542 = vshrl.u32 %v541, 7
        %v543 = vsub.s32 %v540, %v542
        %v544 = vrot.slane %v459, %v543
        %vm545 = vcmask 654912
        %v546 = vsel %vm545, %v544, %v539
        %v547 = vadd.s32 %v479, 4294967216
        %v548 = vlaneseq
        %v549 = vshrl.u32 %v548, 7
        %v550 = vsub.s32 %v547, %v549
        %v551 = vrot.slane %v462, %v550
        %vm552 = vcmask 720512
        %v553 = vsel %vm552, %v551, %v546
        %v554 = vadd.s32 %v479, 4294967208
        %v555 = vlaneseq
        %v556 = vshrl.u32 %v555, 7
        %v557 = vsub.s32 %v554, %v556
        %v558 = vrot.slane %v465, %v557
        %vm559 = vcmask 786112
        %v560 = vsel %vm559, %v558, %v553
        %v561 = vadd.s32 %v479, 4294967200
        %v562 = vlaneseq
        %v563 = vshrl.u32 %v562, 7
        %v564 = vsub.s32 %v561, %v563
        %v565 = vrot.slane %v468, %v564
        %vm566 = vcmask 851712
        %v567 = vsel %vm566, %v565, %v560
        %v568 = vadd.s32 %v479, 4294967192
        %v569 = vlaneseq
        %v570 = vshrl.u32 %v569, 7
        %v571 = vsub.s32 %v568, %v570
        %v572 = vrot.slane %v471, %v571
        %vm573 = vcmask 917312
        %v574 = vsel %vm573, %v572, %v567
        %v575 = vadd.s32 %v479, 4294967184
        %v576 = vlaneseq
        %v577 = vshrl.u32 %v576, 7
        %v578 = vsub.s32 %v575, %v577
        %v579 = vrot.slane %v474, %v578
        %vm580 = vcmask 982912
        %v581 = vsel %vm580, %v579, %v574
        %v582 = vadd.s32 %v479, 4294967176
        %v583 = vlaneseq
        %v584 = vshrl.u32 %v583, 7
        %v585 = vsub.s32 %v582, %v584
        %v586 = vrot.slane %v477, %v585
        %vm587 = vcmask 1048512
        %v588 = vsel %vm587, %v586, %v581
        %590 = vst [vmem:[%s196] sm:$0x1] %v588
        %s591 = sand.u32 %s97, 1
        %s592 = scalar_lea.sflag [#allocation5], %s591
        %s593 = sand.u32 %s97, 1
        %s594 = scalar_lea.vmem [#allocation6], %s593
        // Predicated region
        $region37: #{tpu_custom_call.1} parent=31 // pred_check
          %p595 = pneg %p107
        $region38: #{tpu_custom_call.1} parent=31 // pred_check_branch
          %597 = sbr.rel (%p595) target = $region40
        $region39: #{tpu_custom_call.1} parent=31 // pred_region
          %s599 = ssub.s32 16, 16
          %600 = vsyncadd %s592, %s599
          %s601 = smul.addr %s21, 16
          %s602 = scalar_lea.hbm %s3, %s601
          %s604 = sshll.u32 %s594, 4
          %s605 = int_to_ptr.vmem [resolvable:$true] %s604
          %607 = dma.vmem_to_hbm [thread:$0]  %s605, 16, %s602, %s592
        $region40: #{tpu_custom_call.1} parent=31 // pred_fallthru
          _
      $region32: #{tpu_custom_call.1} parent=5 // pred_fallthru
        _
      %p608 = scmp.le.s32.totalorder 2, %s16
      // Predicated region
      $region41: #{tpu_custom_call.1} parent=5 // pred_check
        %p609 = pneg %p608
      $region42: #{tpu_custom_call.1} parent=5 // pred_check_branch
        %611 = sbr.rel (%p609) target = $region44
      $region43: #{tpu_custom_call.1} parent=5 // pred_region
        %s612 = ssub.s32 %s16, 2
        // Predicated region
        $region45: #{tpu_custom_call.1} parent=43 // pred_check
          %p613 = pneg %p113
        $region46: #{tpu_custom_call.1} parent=43 // pred_check_branch
          %615 = sbr.rel (%p613) target = $region48
        $region47: #{tpu_custom_call.1} parent=43 // pred_region
          %s616 = sand.u32 %s98, 1
          %s617 = scalar_lea.sflag [#allocation5], %s616
          %s618 = sand.u32 %s98, 1
          %s619 = scalar_lea.vmem [#allocation6], %s618
          %620 = dma.done %s617, 16
        $region48: #{tpu_custom_call.1} parent=43 // pred_fallthru
          _
      $region44: #{tpu_custom_call.1} parent=5 // pred_fallthru
        _
    $region6: #{tpu_custom_call.1} parent=1 // loop_footer
      %s20 = sadd.s32 1, %s16
    $region7: #{tpu_custom_call.1} parent=1 // loop_footer_branch
      %15 = sbr.rel target = $region3
    $region8: #{tpu_custom_call.1} parent=1 // loop_exit
      _
    %621 = vsyncpa [#allocation4], 1
    %s622 = scalar_lea.sflag [#allocation4], 1
    %623 = vsyncpa %s622, 1
    %624 = vsyncpa [#allocation5], 1
    %s625 = scalar_lea.sflag [#allocation5], 1
    %626 = vsyncpa %s625, 1

</llo_original>
